<compile_context>
chip_gen: v7x
topology: tpu7x:2x2x1
jax: 0.10.0
libtpu: 0.0.40
codegen_flags: <defaults>
</compile_context>

<pallas_src>
import numpy as np
import jax
import jax.numpy as jnp
from jax import lax
from jax.experimental import pallas as pl
from jax.experimental.pallas import tpu as pltpu

NODE_DIM = 3
IN_DIM = NODE_DIM * 2        # 6
HIDDEN_DIM = 32              # args.hidden_dim
PAST_LENGTH = 8              # args.past_length
BATCH = 2
AGENTS = 4
MAX_T_LEN = 200


# ----------------------------------------------------------------------------
# Fused kernel: folded matmul -> ftraj ; L2-normalize ; full q q^T correlation.
# ----------------------------------------------------------------------------
def _encoder_kernel(x_ref, wc_ref, b_ref, f_ref, c_ref):
    # x_ref : (BN, T*in_dim)   flattened past trajectories
    # wc_ref: (T*in_dim, D)    fully folded weight (see prepare_fused_params)
    # b_ref : (1, D)           fully folded bias
    # f_ref : (BN, D)          ftraj_input
    # c_ref : (BN, BN)         full q @ q^T (block-diag extracted in wrapper)
    f = (jnp.dot(x_ref[...], wc_ref[...], preferred_element_type=jnp.float32)
         + b_ref[...])
    f_ref[...] = f

    # F.normalize(f, p=2, dim=-1): f / max(||f||, 1e-12) == f * rsqrt(max(||f||^2, 1e-24))
    # Kept in f32; rsqrt goes to the EUP slot (free w.r.t. the VALU path).
    sq = jnp.sum(f * f, axis=-1, keepdims=True)
    q = f * lax.rsqrt(jnp.maximum(sq, 1e-24))

    # ONE MXU push for the whole correlation: contract the LAST axis of BOTH
    # operands so the MXU consumes the RHS without an explicit transpose.
    c_ref[...] = lax.dot_general(
        q, q,
        dimension_numbers=(((1,), (1,)), ((), ())),
        preferred_element_type=jnp.float32)


def past_encoder_forward(fused, inputs, batch_size, agent_num):
    # inputs: (B*N, T, in_dim)
    BN, T, in_dim = inputs.shape
    assert BN == batch_size * agent_num
    # fused params are baked for a fixed past_length (eval-mode dropout assumed)
    assert T == fused["seq_len"], "rebuild fused params if past_length changes"
    x_flat = inputs.reshape(BN, T * in_dim)   # contiguous flatten; no relayout

    D = HIDDEN_DIM
    flops = (2 * BN * (T * in_dim) * D        # folded matmul
             + 2 * BN * BN * D                # q @ q^T
             + 4 * BN * D)                    # bias add, square, scale
    bytes_accessed = 4 * (x_flat.size + fused["wc"].size + fused["b_eff"].size
                          + BN * D + BN * BN)
    vmem_spec = pl.BlockSpec(memory_space=pltpu.MemorySpace.VMEM)

    ftraj, corr_full = pl.pallas_call(
        _encoder_kernel,
        out_shape=(
            jax.ShapeDtypeStruct((BN, D), jnp.float32),
            jax.ShapeDtypeStruct((BN, BN), jnp.float32),
        ),
        in_specs=[vmem_spec, vmem_spec, vmem_spec],
        out_specs=(vmem_spec, vmem_spec),
        cost_estimate=pl.CostEstimate(flops=flops, transcendentals=BN,
                                      bytes_accessed=bytes_accessed),
    )(x_flat, fused["wc"], fused["b_eff"])

    # feat_corr[b] = q_b @ q_b^T is exactly the b-th diagonal block of corr_full.
    # (cross-scene blocks are discarded; B is a small static int)
    feat_corr = jnp.stack(
        [corr_full[b * agent_num:(b + 1) * agent_num,
                   b * agent_num:(b + 1) * agent_num]
         for b in range(batch_size)], axis=0)

    # TODO(synk): interaction / interaction_hyper* branches omitted (MS_HGNN_*
    #             classes not provided); output_feature == ftraj_input.
    output_feature = ftraj
    return output_feature, feat_corr


# ----------------------------------------------------------------------------
# Parameters, positional-encoding table, and one-time weight folding.
# ----------------------------------------------------------------------------
def build_pos_enc(max_len, d_model):
    pe = np.zeros((max_len, d_model), dtype=np.float32)
    position = np.arange(0, max_len, dtype=np.float32)[:, None]
    div_term = np.exp(np.arange(0, d_model, 2, dtype=np.float32)
                      * (-np.log(10000.0) / d_model))
    pe[:, 0::2] = np.sin(position * div_term)
    pe[:, 1::2] = np.cos(position * div_term)
    return jnp.asarray(pe)


def init_params(key):
    ks = jax.random.split(key, 6)
    scale = 0.02
    w1 = scale * jax.random.normal(ks[0], (IN_DIM, HIDDEN_DIM), jnp.float32)
    b1 = scale * jax.random.normal(ks[1], (1, HIDDEN_DIM), jnp.float32)
    # pos_encoder.fc : Linear(2*D, D); split weight into x-part and pe-part
    w2 = scale * jax.random.normal(ks[2], (2 * HIDDEN_DIM, HIDDEN_DIM), jnp.float32)
    b2 = scale * jax.random.normal(ks[3], (1, HIDDEN_DIM), jnp.float32)
    # input_fc2 : Linear(D * past_length, D)
    w3 = scale * jax.random.normal(
        ks[4], (HIDDEN_DIM * PAST_LENGTH, HIDDEN_DIM), jnp.float32)
    b3 = scale * jax.random.normal(ks[5], (1, HIDDEN_DIM), jnp.float32)
    return dict(w1=w1, b1=b1, w2x=w2[:HIDDEN_DIM], w2p=w2[HIDDEN_DIM:],
                b2=b2, w3=w3, b3=b3)


def prepare_fused_params(params, pe_table, seq_len):
    """One-time algebraic folding of input_fc -> pos_encoder.fc -> input_fc2
    (eval-mode: dropout = identity)."""
    D = HIDDEN_DIM
    w_fused = params["w1"] @ params["w2x"]                              # (in_dim, D)
    bias_t = (params["b1"] @ params["w2x"]
              + pe_table[:seq_len] @ params["w2p"] + params["b2"])      # (T, D)
    w3_r = params["w3"].reshape(seq_len, D, D)                          # W3[t*D+i, j]
    # Wc[t] = w_fused @ W3[t], stacked over t along the contraction axis.
    wc = jnp.einsum("ki,tij->tkj", w_fused, w3_r).reshape(seq_len * IN_DIM, D)
    b_eff = jnp.einsum("ti,tij->j", bias_t, w3_r)[None, :] + params["b3"]   # (1, D)
    return dict(wc=wc, b_eff=b_eff, seq_len=seq_len)


# ----------------------------------------------------------------------------
# Pure-JAX reference (unfused, mirrors the original PyTorch math) for checking.
# ----------------------------------------------------------------------------
def reference_forward(params, inputs, batch_size, agent_num, pe_table):
    BN, T, _ = inputs.shape
    h = inputs.reshape(BN * T, IN_DIM) @ params["w1"] + params["b1"]
    pe = jnp.tile(pe_table[:T, :], (BN, 1))
    y = h @ params["w2x"] + pe @ params["w2p"] + params["b2"]
    x_bnd = y.reshape(batch_size, agent_num, T * HIDDEN_DIM)
    f = x_bnd @ params["w3"] + params["b3"]
    norm = jnp.sqrt(jnp.sum(f * f, axis=-1, keepdims=True))
    q = f / jnp.maximum(norm, 1e-12)
    corr = jnp.einsum("bnd,bmd->bnm", q, q)
    return f.reshape(batch_size * agent_num, -1), corr


if __name__ == "__main__":
    key = jax.random.PRNGKey(0)
    pkey, xkey = jax.random.split(key)
    params = init_params(pkey)
    pe_table = build_pos_enc(MAX_T_LEN, HIDDEN_DIM)
    fused = prepare_fused_params(params, pe_table, PAST_LENGTH)

    inputs = jax.random.normal(
        xkey, (BATCH * AGENTS, PAST_LENGTH, IN_DIM), jnp.float32)

    out, corr = past_encoder_forward(fused, inputs, BATCH, AGENTS)
    out = jax.block_until_ready(out)
    corr = jax.block_until_ready(corr)

    ref_out, ref_corr = reference_forward(params, inputs, BATCH, AGENTS, pe_table)
    assert np.allclose(np.asarray(out), np.asarray(ref_out), atol=1e-5, rtol=1e-4)
    assert np.allclose(np.asarray(corr), np.asarray(ref_corr), atol=1e-5, rtol=1e-4)
    assert out.shape == (BATCH * AGENTS, HIDDEN_DIM)
    assert corr.shape == (BATCH, AGENTS, AGENTS)

    print("KERNEL_OK")
</pallas_src>

<mosaic_0001>
module attributes {stable_mosaic.version = 11 : i64} {
  func.func @_encoder_kernel(%arg0: memref<8x48xf32, #tpu.memory_space<vmem>>, %arg1: memref<48x32xf32, #tpu.memory_space<vmem>>, %arg2: memref<1x32xf32, #tpu.memory_space<vmem>>, %arg3: memref<8x32xf32, #tpu.memory_space<vmem>>, %arg4: memref<8x8xf32, #tpu.memory_space<vmem>>) attributes {dimension_semantics = [], scalar_prefetch = 0 : i64, scratch_operands = 0 : i64, tpu.core_type = #tpu.core_type<tc>} {
    %c0 = arith.constant 0 : index
    %c0_0 = arith.constant 0 : index
    %0 = vector.load %arg0[%c0, %c0_0] : memref<8x48xf32, #tpu.memory_space<vmem>>, vector<8x48xf32>
    %c0_1 = arith.constant 0 : index
    %c0_2 = arith.constant 0 : index
    %1 = vector.load %arg1[%c0_1, %c0_2] : memref<48x32xf32, #tpu.memory_space<vmem>>, vector<48x32xf32>
    %cst = arith.constant dense<0.000000e+00> : vector<8x32xf32>
    %2 = tpu.matmul %0, %1, %cst {dimension_numbers = #tpu.dot_dimension_numbers<[1], [0], [0], [1], [0, 0, 1, 1], [], []>} : vector<8x48xf32>, vector<48x32xf32>, vector<8x32xf32> -> vector<8x32xf32>
    %c0_3 = arith.constant 0 : index
    %c0_4 = arith.constant 0 : index
    %3 = vector.load %arg2[%c0_3, %c0_4] : memref<1x32xf32, #tpu.memory_space<vmem>>, vector<1x32xf32>
    %4 = vector.broadcast %3 : vector<1x32xf32> to vector<8x32xf32>
    %5 = arith.addf %2, %4 : vector<8x32xf32>
    %c0_5 = arith.constant 0 : index
    %c0_6 = arith.constant 0 : index
    %6 = vector.load %arg3[%c0_5, %c0_6] : memref<8x32xf32, #tpu.memory_space<vmem>>, vector<8x32xf32>
    tpu.vector_store %arg3[%c0_5, %c0_6], %5 {strides = array<i32>} : memref<8x32xf32, #tpu.memory_space<vmem>>, vector<8x32xf32>,
    %7 = arith.mulf %5, %5 : vector<8x32xf32>
    %cst_7 = arith.constant dense<0.000000e+00> : vector<8xf32>
    %8 = vector.multi_reduction <add>, %7, %cst_7 [1] : vector<8x32xf32> to vector<8xf32>
    %9 = vector.shape_cast %8 : vector<8xf32> to vector<8x1xf32>
    %cst_8 = arith.constant 1.000000e-24 : f32
    %10 = vector.broadcast %cst_8 : f32 to vector<8x1xf32>
    %11 = arith.maximumf %9, %10 : vector<8x1xf32>
    %12 = math.rsqrt %11 : vector<8x1xf32>
    %13 = vector.broadcast %12 : vector<8x1xf32> to vector<8x32xf32>
    %14 = arith.mulf %5, %13 : vector<8x32xf32>
    %cst_9 = arith.constant dense<0.000000e+00> : vector<8x8xf32>
    %15 = tpu.matmul %14, %14, %cst_9 {dimension_numbers = #tpu.dot_dimension_numbers<[1], [1], [0], [0], [0, 0, 1, 0], [], []>} : vector<8x32xf32>, vector<8x32xf32>, vector<8x8xf32> -> vector<8x8xf32>
    %c0_10 = arith.constant 0 : index
    %c0_11 = arith.constant 0 : index
    %16 = vector.load %arg4[%c0_10, %c0_11] : memref<8x8xf32, #tpu.memory_space<vmem>>, vector<8x8xf32>
    tpu.vector_store %arg4[%c0_10, %c0_11], %15 {strides = array<i32>} : memref<8x8xf32, #tpu.memory_space<vmem>>, vector<8x8xf32>,
    return
  }
}

</mosaic_0001>

<llo_original>
// kernel: tpu_custom_call.1
$region0: #{tpu_custom_call.1}
  #allocation0 [shape = 'u32[]', space=smem, size = 0x4, offset = 0x4, fixed_abs, tag = 'smem constant byte address 0x4 - core index']
  #allocation1 [shape = 'u32[144,128]{1,0:T(1,128)}', space=vmem, size = 0x12000, scoped, tag = 'internal scratch']
  %s0 = inlined_call_operand.vmem [shape: f32[8,48], index: 0, kind: input, shape index: {}]
  %s1 = inlined_call_operand.vmem [shape: f32[48,32], index: 1, kind: input, shape index: {}]
  %s2 = inlined_call_operand.vmem [shape: f32[1,32], index: 2, kind: input, shape index: {}]
  %s3 = inlined_call_operand.hbm [shape: f32[8,32], index: 3, kind: output, shape index: {0}]
  %s4 = inlined_call_operand.hbm [shape: f32[8,8], index: 4, kind: output, shape index: {1}]
  %5 = xla_tuple %s3, %s4
  %s6 = sld [smem:[#allocation0]]
  $region30: #{tpu_custom_call.1} parent=0
    _
  %s8 = ssub.s32 1, %s6
  %s9 = scalar_select 0, %s8, %s6
  $region1: #{tpu_custom_call.1} parent=0
    #allocation2 [shape = 'u8[4096]{0}', space=vmem, size = 0x1000, scoped, tag = 'output window, operand 0, single buffered']
    #allocation3 [shape = 's32[1]{0}', space=sflag, size = 0x4, scoped, tag = 'scoped memory for tpu_custom_call.1']
    #allocation4 [shape = 'u8[4096]{0}', space=vmem, size = 0x1000, scoped, tag = 'output window, operand 1, single buffered']
    #allocation5 [shape = 's32[1]{0}', space=sflag, size = 0x4, scoped, tag = 'scoped memory for tpu_custom_call.1']
    %10 = vsyncpa [#allocation3], 0
    %11 = vsyncpa [#allocation5], 0
    // Predicated region
    $region2: #{tpu_custom_call.1} parent=1 // pred_check
      _
    $region3: #{tpu_custom_call.1} parent=1 // pred_check_branch
      %13 = sbr.rel (0) target = $region5
    $region4: #{tpu_custom_call.1} parent=1 // pred_region
      _
    $region5: #{tpu_custom_call.1} parent=1 // pred_fallthru
      _
    // Predicated region
    $region6: #{tpu_custom_call.1} parent=1 // pred_check
      _
    $region7: #{tpu_custom_call.1} parent=1 // pred_check_branch
      %15 = sbr.rel (0) target = $region9
    $region8: #{tpu_custom_call.1} parent=1 // pred_region
      _
    $region9: #{tpu_custom_call.1} parent=1 // pred_fallthru
      _
    // Predicated region
    $region10: #{tpu_custom_call.1} parent=1 // pred_check
      _
    $region11: #{tpu_custom_call.1} parent=1 // pred_check_branch
      %17 = sbr.rel (0) target = $region13
    $region12: #{tpu_custom_call.1} parent=1 // pred_region
      _
    $region13: #{tpu_custom_call.1} parent=1 // pred_fallthru
      _
    %v18 = vld [vmem:[%s0] sm:$0xff]
    %v19 = vld [vmem:[%s1] sm:$0xff]
    %v20 = vld [vmem:[%s1 + $0x8] sm:$0xff]
    %v21 = vld [vmem:[%s1 + $0x10] sm:$0xff]
    %v22 = vld [vmem:[%s1 + $0x18] sm:$0xff]
    %v23 = vld [vmem:[%s1 + $0x20] sm:$0xff]
    %v24 = vld [vmem:[%s1 + $0x28] sm:$0xff]
    %v25 = vld [vmem:[%s2] sm:$0x1]
    %v27 = vlaneseq
    %v28 = vshrl.u32 %v27, 7
    %v29 = vsub.s32 0, %v28
    %v30 = vrot.slane %v25, %v29
    %vm32 = vcmask 392192
    %v34 = vsel %vm32, %v18, 0
    %36 = vmatprep.subr.mxu0 0.0
    %37 = vmatpush1.msra.mxu0 %v19
    %38 = vmatprep.subr.mxu0 0.0
    %39 = vmatpush1.msra.mxu0 %v20
    %40 = vmatprep.subr.mxu0 0.0
    %41 = vmatpush1.msra.mxu0 %v21
    %42 = vmatprep.subr.mxu0 0.0
    %43 = vmatpush1.msra.mxu0 %v22
    %44 = vmatprep.subr.mxu0 0.0
    %45 = vmatpush1.msra.mxu0 %v23
    %46 = vmatprep.subr.mxu0 0.0
    %47 = vmatpush1.msra.mxu0 %v24
    %48 = vmatprep.subr.mxu0 0.0
    %49 = vmatpush1.msra.mxu0 0.0
    %50 = vmatprep.subr.mxu0 0.0
    %51 = vmatpush1.msra.mxu0 0.0
    %52 = vmatprep.subr.mxu0 0.0
    %53 = vmatpush1.msra.mxu0 0.0
    %54 = vmatprep.subr.mxu0 0.0
    %55 = vmatpush1.msra.mxu0 0.0
    %56 = vmatprep.subr.mxu0 0.0
    %57 = vmatpush1.msra.mxu0 0.0
    %58 = vmatprep.subr.mxu0 0.0
    %59 = vmatpush1.msra.mxu0 0.0
    %60 = vmatprep.subr.mxu0 0.0
    %61 = vmatpush1.msra.mxu0 0.0
    %62 = vmatprep.subr.mxu0 0.0
    %63 = vmatpush1.msra.mxu0 0.0
    %64 = vmatprep.subr.mxu0 0.0
    %65 = vmatpush1.msra.mxu0 0.0
    %66 = vmatprep.subr.mxu0 0.0
    %67 = vmatpush1.msra.mxu0 0.0
    %68 = vmatprep.subr.mxu0 0.0
    %69 = vmatpush1.msra.mxu0 0.0
    %70 = vmatprep.subr.mxu0 0.0
    %71 = vmatpush1.msra.mxu0 0.0
    %72 = vmatprep.subr.mxu0 0.0
    %73 = vmatpush1.msra.mxu0 0.0
    %74 = vmatprep.subr.mxu0 0.0
    %75 = vmatpush1.msra.mxu0 0.0
    %76 = vmatprep.subr.mxu0 0.0
    %77 = vmatpush1.msra.mxu0 0.0
    %78 = vmatprep.subr.mxu0 0.0
    %79 = vmatpush1.msra.mxu0 0.0
    %80 = vmatprep.subr.mxu0 0.0
    %81 = vmatpush1.msra.mxu0 0.0
    %82 = vmatprep.subr.mxu0 0.0
    %83 = vmatpush1.msra.mxu0 0.0
    %84 = vmatprep.subr.mxu0 0.0
    %85 = vmatpush1.msra.mxu0 0.0
    %86 = vmatprep.subr.mxu0 0.0
    %87 = vmatpush1.msra.mxu0 0.0
    %88 = vmatprep.subr.mxu0 0.0
    %89 = vmatpush1.msra.mxu0 0.0
    %90 = vmatprep.subr.mxu0 0.0
    %91 = vmatpush1.msra.mxu0 0.0
    %92 = vmatprep.subr.mxu0 0.0
    %93 = vmatpush1.msra.mxu0 0.0
    %94 = vmatprep.subr.mxu0 0.0
    %95 = vmatpush1.msra.mxu0 0.0
    %96 = vmatprep.subr.mxu0 0.0
    %97 = vmatpush1.msra.mxu0 0.0
    %98 = vmatprep.subr.mxu0 0.0
    %99 = vmatpush1.msra.mxu0 0.0
    %100 = vmatprep.mubr.f32.mxu0 0.0
    %101 = vmatmul.mubr.f32.gmra.mrb[0].mxu0 %v34
    %v102 = vpop.f32.mrb[0].mxu0
    %v103 = vadd.f32 %v30, %v102
    %v104 = vpop.f32.mrb[0].mxu0
    %105 = vdwg.mxu0
    %vm106 = vcmask 261120
    %107 = vst.msk [vmem:[#allocation2] sm:$0xff] %vm106, %v103
    %v108 = vmul.f32 %v103, %v103
    %v109 = vsel %vm106, %v108, 0.0
    %110 = vadd.xlane.f32.xlu0 %v109
    %v111 = vpop.xlane.xlu0 %110
    %v112 = vmax.f32 %v111, 1e-24
    %v113 = vrsqrt.pop %v112
    %v114 = vmul.f32 %v103, %v113
    %v116 = vsel %vm106, %v114, 0
    %118 = vmatprep.subr.mxu0 0.0
    %119 = vmatpush1.xpose.msra.mxu0 %v116
    %120 = vmatprep.subr.mxu0 0.0
    %121 = vmatpush1.xpose.msra.mxu0 0.0
    %122 = vmatprep.subr.mxu0 0.0
    %123 = vmatpush1.xpose.msra.mxu0 0.0
    %124 = vmatprep.subr.mxu0 0.0
    %125 = vmatpush1.xpose.msra.mxu0 0.0
    %126 = vmatprep.subr.mxu0 0.0
    %127 = vmatpush1.xpose.msra.mxu0 0.0
    %128 = vmatprep.subr.mxu0 0.0
    %129 = vmatpush1.xpose.msra.mxu0 0.0
    %130 = vmatprep.subr.mxu0 0.0
    %131 = vmatpush1.xpose.msra.mxu0 0.0
    %132 = vmatprep.subr.mxu0 0.0
    %133 = vmatpush1.xpose.msra.mxu0 0.0
    %134 = vmatprep.subr.mxu0 0.0
    %135 = vmatpush1.xpose.msra.mxu0 0.0
    %136 = vmatprep.subr.mxu0 0.0
    %137 = vmatpush1.xpose.msra.mxu0 0.0
    %138 = vmatprep.subr.mxu0 0.0
    %139 = vmatpush1.xpose.msra.mxu0 0.0
    %140 = vmatprep.subr.mxu0 0.0
    %141 = vmatpush1.xpose.msra.mxu0 0.0
    %142 = vmatprep.subr.mxu0 0.0
    %143 = vmatpush1.xpose.msra.mxu0 0.0
    %144 = vmatprep.subr.mxu0 0.0
    %145 = vmatpush1.xpose.msra.mxu0 0.0
    %146 = vmatprep.subr.mxu0 0.0
    %147 = vmatpush1.xpose.msra.mxu0 0.0
    %148 = vmatprep.subr.mxu0 0.0
    %149 = vmatpush1.xpose.msra.mxu0 0.0
    %150 = vmatprep.subr.mxu0 0.0
    %151 = vmatpush1.xpose.msra.mxu0 0.0
    %152 = vmatprep.subr.mxu0 0.0
    %153 = vmatpush1.xpose.msra.mxu0 0.0
    %154 = vmatprep.subr.mxu0 0.0
    %155 = vmatpush1.xpose.msra.mxu0 0.0
    %156 = vmatprep.subr.mxu0 0.0
    %157 = vmatpush1.xpose.msra.mxu0 0.0
    %158 = vmatprep.subr.mxu0 0.0
    %159 = vmatpush1.xpose.msra.mxu0 0.0
    %160 = vmatprep.subr.mxu0 0.0
    %161 = vmatpush1.xpose.msra.mxu0 0.0
    %162 = vmatprep.subr.mxu0 0.0
    %163 = vmatpush1.xpose.msra.mxu0 0.0
    %164 = vmatprep.subr.mxu0 0.0
    %165 = vmatpush1.xpose.msra.mxu0 0.0
    %166 = vmatprep.subr.mxu0 0.0
    %167 = vmatpush1.xpose.msra.mxu0 0.0
    %168 = vmatprep.subr.mxu0 0.0
    %169 = vmatpush1.xpose.msra.mxu0 0.0
    %170 = vmatprep.subr.mxu0 0.0
    %171 = vmatpush1.xpose.msra.mxu0 0.0
    %172 = vmatprep.subr.mxu0 0.0
    %173 = vmatpush1.xpose.msra.mxu0 0.0
    %174 = vmatprep.subr.mxu0 0.0
    %175 = vmatpush1.xpose.msra.mxu0 0.0
    %176 = vmatprep.subr.mxu0 0.0
    %177 = vmatpush1.xpose.msra.mxu0 0.0
    %178 = vmatprep.subr.mxu0 0.0
    %179 = vmatpush1.xpose.msra.mxu0 0.0
    %180 = vmatprep.subr.mxu0 0.0
    %181 = vmatpush1.xpose.msra.mxu0 0.0
    %182 = vmatprep.mubr.f32.mxu0 0.0
    %183 = vmatmul.mubr.f32.gmra.mrb[0].mxu0 %v116
    %v184 = vpop.f32.mrb[0].mxu0
    %v185 = vadd.f32 0.0, %v184
    %v186 = vpop.f32.mrb[0].mxu0
    %187 = vdwg.mxu0
    %vm188 = vcmask 64512
    %189 = vst.msk [vmem:[#allocation4] sm:$0xff] %vm188, %v185
    // Predicated region
    $region14: #{tpu_custom_call.1} parent=1 // pred_check
      _
    $region15: #{tpu_custom_call.1} parent=1 // pred_check_branch
      %191 = sbr.rel (0) target = $region17
    $region16: #{tpu_custom_call.1} parent=1 // pred_region
      %s193 = ssub.s32 128, 128
      %194 = vsyncadd [#allocation3], %s193
      %s196 = sshll.u32 [#allocation2], 4
      %s197 = int_to_ptr.vmem [resolvable:$true] %s196
      %199 = dma.vmem_to_hbm [thread:$0]  %s197, 128, %s3, [#allocation3]
    $region17: #{tpu_custom_call.1} parent=1 // pred_fallthru
      _
    // Predicated region
    $region18: #{tpu_custom_call.1} parent=1 // pred_check
      _
    $region19: #{tpu_custom_call.1} parent=1 // pred_check_branch
      %201 = sbr.rel (0) target = $region21
    $region20: #{tpu_custom_call.1} parent=1 // pred_region
      %s203 = ssub.s32 128, 128
      %204 = vsyncadd [#allocation5], %s203
      %s206 = sshll.u32 [#allocation4], 4
      %s207 = int_to_ptr.vmem [resolvable:$true] %s206
      %209 = dma.vmem_to_hbm [thread:$0]  %s207, 128, %s4, [#allocation5]
    $region21: #{tpu_custom_call.1} parent=1 // pred_fallthru
      _
    // Predicated region
    $region22: #{tpu_custom_call.1} parent=1 // pred_check
      _
    $region23: #{tpu_custom_call.1} parent=1 // pred_check_branch
      %211 = sbr.rel (0) target = $region25
    $region24: #{tpu_custom_call.1} parent=1 // pred_region
      %212 = dma.done [#allocation3], 128
    $region25: #{tpu_custom_call.1} parent=1 // pred_fallthru
      _
    // Predicated region
    $region26: #{tpu_custom_call.1} parent=1 // pred_check
      _
    $region27: #{tpu_custom_call.1} parent=1 // pred_check_branch
      %214 = sbr.rel (0) target = $region29
    $region28: #{tpu_custom_call.1} parent=1 // pred_region
      %215 = dma.done [#allocation5], 128
    $region29: #{tpu_custom_call.1} parent=1 // pred_fallthru
      _
    %216 = vsyncpa [#allocation3], 1
    %217 = vsyncpa [#allocation5], 1

</llo_original>
